<compile_context>
chip_gen: v7x
topology: tpu7x:2x2x1
jax: 0.10.0
libtpu: 0.0.40
codegen_flags: <defaults>
</compile_context>

<pallas_src>
from functools import partial

import jax
import jax.numpy as jnp
from jax import lax
from jax.experimental import pallas as pl
from jax.experimental.pallas import tpu as pltpu

_LANES = 128
_NEG_BIG = -1e30


def _align_up(n, m):
    return ((n + m - 1) // m) * m


def _layout(B, T, G, L, H):
    """Static (sublane-aligned) row layout of the packed constant slab."""
    BT = B * T
    HBT = H * BT
    Din = G + L + 1                    # [gf | lf | 1]
    Gh = G // 2
    GO = G + L
    r_wmain = 0                                   # fused input-projection weight  [Din, 4G]
    r_walpha = _align_up(r_wmain + Din, 8)        # alpha hidden-layer weight      [Din, Gh]
    r_mask = _align_up(r_walpha + Din, 8)         # head mask [HBT,G] | add mask [HBT,BT]
    r_wo = _align_up(r_mask + HBT, 8)             # out_proj weight^T              [G, G]
    r_wout = _align_up(r_wo + G, 8)               # output-layer weight^T          [G, GO]
    r_bias = _align_up(r_wout + G, 8)             # 2 bias rows
    n_rows = _align_up(r_bias + 2, 8)
    return dict(BT=BT, HBT=HBT, Din=Din, Gh=Gh, GO=GO,
                r_wmain=r_wmain, r_walpha=r_walpha, r_mask=r_mask,
                r_wo=r_wo, r_wout=r_wout, r_bias=r_bias, n_rows=n_rows)


def pack_modal_fusion7_params(params, B, T, num_heads):
    """ONE-TIME packing of all weights/biases/masks into a single [n_rows, 128] f32 slab."""
    f32 = jnp.float32
    in_w = jnp.asarray(params["in_proj_w"], f32)
    in_b = jnp.asarray(params["in_proj_b"], f32)
    G = in_w.shape[1]
    GO = params["out_w"].shape[0]
    L = GO - G
    H = num_heads
    d = G // H
    lay = _layout(B, T, G, L, H)
    BT, HBT, Din, Gh = lay["BT"], lay["HBT"], lay["Din"], lay["Gh"]
    assert params["a1_w"].shape[0] == Gh
    assert 4 * G <= _LANES and G + BT <= _LANES and G + Gh + 1 <= _LANES and GO <= _LANES

    Wq, Wk, Wv = jnp.split(in_w, 3, axis=0)
    bq, bk, bv = jnp.split(in_b, 3)

    if params.get("align_w") is not None:
        align_w = jnp.asarray(params["align_w"], f32)          # [G, L]
        align_b = jnp.asarray(params["align_b"], f32)          # [G]
    else:                                                       # global_dim == local_dim
        align_w = jnp.eye(G, dtype=f32)
        align_b = jnp.zeros((G,), f32)

    q_scale = 1.0 / (d ** 0.5)        # MHA per-head scaling (folded into the Q block)
    alt_scale = 1.0 / (G ** 0.5)      # cross-batch attention scaling (folded into lal)

    slab = jnp.zeros((lay["n_rows"], _LANES), f32)

    # --- fused input projection: [gf | lf | 1] -> [q*q_scale | v | lal*alt_scale | k] ---
    wm = jnp.zeros((Din, 4 * G), f32)
    wm = wm.at[:G, 0 * G:1 * G].set(Wq.T * q_scale)
    wm = wm.at[:G, 1 * G:2 * G].set(Wv.T)
    wm = wm.at[G:G + L, 2 * G:3 * G].set(align_w.T * alt_scale)
    wm = wm.at[G:G + L, 3 * G:4 * G].set(align_w.T @ Wk.T)          # K folded through align
    wm = wm.at[G + L, 0 * G:1 * G].set(bq * q_scale)                # biases via the 1-lane
    wm = wm.at[G + L, 1 * G:2 * G].set(bv)
    wm = wm.at[G + L, 2 * G:3 * G].set(align_b * alt_scale)
    wm = wm.at[G + L, 3 * G:4 * G].set(align_b @ Wk.T + bk)
    slab = slab.at[lay["r_wmain"]:lay["r_wmain"] + Din, :4 * G].set(wm)

    # --- alpha hidden layer: [gf | lf | 1] -> gf @ a1_w.T + a1_b ---
    wa = jnp.zeros((Din, Gh), f32)
    wa = wa.at[:G, :].set(jnp.asarray(params["a1_w"], f32).T)
    wa = wa.at[G + L, :].set(jnp.asarray(params["a1_b"], f32))
    slab = slab.at[lay["r_walpha"]:lay["r_walpha"] + Din, :Gh].set(wa)

    # --- precomputed masks ---
    head_mask = ((jnp.arange(HBT) // BT)[:, None] ==
                 (jnp.arange(G) // d)[None, :]).astype(f32)                       # [HBT, G]
    same_batch = (((jnp.arange(HBT) % BT) // T)[:, None] ==
                  (jnp.arange(BT) // T)[None, :])
    add_mask = jnp.where(same_batch, 0.0, _NEG_BIG).astype(f32)                   # [HBT, BT]
    slab = slab.at[lay["r_mask"]:lay["r_mask"] + HBT, :G].set(head_mask)
    slab = slab.at[lay["r_mask"]:lay["r_mask"] + HBT, G:G + BT].set(add_mask)

    # --- output projections ---
    slab = slab.at[lay["r_wo"]:lay["r_wo"] + G, :G].set(
        jnp.asarray(params["out_proj_w"], f32).T)
    slab = slab.at[lay["r_wout"]:lay["r_wout"] + G, :GO].set(
        jnp.asarray(params["out_w"], f32).T)

    # --- bias / small-vector rows ---
    rb = lay["r_bias"]
    slab = slab.at[rb, :G].set(jnp.asarray(params["out_proj_b"], f32))
    slab = slab.at[rb, G:G + Gh].set(jnp.asarray(params["a2_w"], f32).reshape(-1))
    slab = slab.at[rb, G + Gh].set(jnp.asarray(params["a2_b"], f32).reshape(()))
    slab = slab.at[rb + 1, :GO].set(jnp.asarray(params["out_b"], f32))
    return slab


@partial(jax.jit, static_argnames=("num_heads",))
def modal_fusion7_forward(global_features, local_features, const_slab, num_heads):
    B, T, G = global_features.shape
    L = local_features.shape[-1]
    H = num_heads
    lay = _layout(B, T, G, L, H)
    BT, HBT, Din, Gh, GO = lay["BT"], lay["HBT"], lay["Din"], lay["Gh"], lay["GO"]
    r_wmain, r_walpha, r_mask = lay["r_wmain"], lay["r_walpha"], lay["r_mask"]
    r_wo, r_wout, r_bias = lay["r_wo"], lay["r_wout"], lay["r_bias"]

    # Per-call glue: two metadata reshapes + one tiny concat forming the activation slab.
    gfl = global_features.reshape(BT, G).astype(jnp.float32)
    lfl = local_features.reshape(BT, L).astype(jnp.float32)
    xin = jnp.concatenate([gfl, lfl, jnp.ones((BT, 1), jnp.float32)], axis=-1)  # [BT, Din]

    def kernel(x_ref, c_ref, out_ref):
        x = x_ref[...]                                              # [BT, Din]
        g = x[:, :G]                                                # global features

        # 1) fused input projection: q (pre-scaled), v, lal (pre-scaled), k (align folded)
        f = jnp.dot(x, c_ref[r_wmain:r_wmain + Din, :4 * G],
                    preferred_element_type=jnp.float32)             # [BT, 4G]
        q, v = f[:, :G], f[:, G:2 * G]
        lal_s, k = f[:, 2 * G:3 * G], f[:, 3 * G:4 * G]

        # 2) alpha gate: sigmoid(a2 . relu(gf @ a1.T + b1) + b2)
        h1 = jnp.maximum(jnp.dot(x, c_ref[r_walpha:r_walpha + Din, :Gh],
                                 preferred_element_type=jnp.float32), 0.0)       # [BT, Gh]
        a2w = c_ref[r_bias:r_bias + 1, G:G + Gh]                    # [1, Gh]
        a2b = c_ref[r_bias:r_bias + 1, G + Gh:G + Gh + 1]           # [1, 1]
        alpha = jax.nn.sigmoid(jnp.sum(h1 * a2w, axis=-1, keepdims=True) + a2b)  # [BT, 1]

        # 3) multi-head attention, heads stacked along sublanes:
        #    one score matmul + one context matmul for all heads & batches.
        head_mask = c_ref[r_mask:r_mask + HBT, :G]                  # [HBT, G]  0/1
        add_mask = c_ref[r_mask:r_mask + HBT, G:G + BT]             # [HBT, BT] 0/-1e30
        q_stk = jnp.concatenate([q] * H, axis=0) * head_mask        # [HBT, G]
        s = lax.dot_general(q_stk, k, (((1,), (1,)), ((), ())),
                            preferred_element_type=jnp.float32) + add_mask       # [HBT, BT]
        m = jnp.max(s, axis=-1, keepdims=True)
        e = jnp.exp(s - m)
        p = e * pl.reciprocal(jnp.sum(e, axis=-1, keepdims=True), approx=True)
        ctx_stk = jnp.dot(p, v, preferred_element_type=jnp.float32) * head_mask  # [HBT, G]
        ctx = ctx_stk[:BT, :]
        for h in range(1, H):                                       # H static -> unrolled adds
            ctx = ctx + ctx_stk[h * BT:(h + 1) * BT, :]
        attn = (jnp.dot(ctx, c_ref[r_wo:r_wo + G, :G],
                        preferred_element_type=jnp.float32)
                + c_ref[r_bias:r_bias + 1, :G])                     # [BT, G]

        # 4) alternative cross-batch attention (softmax over the batch axis per timestep).
        if B == 2:
            g0, g1 = g[:T, :], g[T:, :]
            l0, l1 = lal_s[:T, :], lal_s[T:, :]
            s00 = jnp.sum(g0 * l0, axis=-1, keepdims=True)
            s01 = jnp.sum(g0 * l1, axis=-1, keepdims=True)
            s10 = jnp.sum(g1 * l0, axis=-1, keepdims=True)
            s11 = jnp.sum(g1 * l1, axis=-1, keepdims=True)
            w0_b0 = jax.nn.sigmoid(s00 - s01)     # softmax([a, b])_0 == sigmoid(a - b)
            w0_b1 = jax.nn.sigmoid(s10 - s11)
            alt = jnp.concatenate([w0_b0 * g0 + (1.0 - w0_b0) * g1,
                                   w0_b1 * g0 + (1.0 - w0_b1) * g1], axis=0)     # [BT, G]
        else:
            rows = []
            for i in range(B):
                gi = g[i * T:(i + 1) * T, :]
                sij = [jnp.sum(gi * lal_s[j * T:(j + 1) * T, :], axis=-1, keepdims=True)
                       for j in range(B)]
                mx = sij[0]
                for j in range(1, B):
                    mx = jnp.maximum(mx, sij[j])
                eij = [jnp.exp(sv - mx) for sv in sij]
                den = eij[0]
                for j in range(1, B):
                    den = den + eij[j]
                inv = pl.reciprocal(den, approx=True)
                alt_i = (eij[0] * inv) * g[:T, :]
                for j in range(1, B):
                    alt_i = alt_i + (eij[j] * inv) * g[j * T:(j + 1) * T, :]
                rows.append(alt_i)
            alt = jnp.concatenate(rows, axis=0)

        # 5) alpha gate + final output projection
        comb = alpha * attn + (1.0 - alpha) * alt                   # [BT, G]
        out_ref[...] = (jnp.dot(comb, c_ref[r_wout:r_wout + G, :GO],
                                preferred_element_type=jnp.float32)
                        + c_ref[r_bias + 1:r_bias + 2, :GO])

    out_flat = pl.pallas_call(
        kernel,
        out_shape=jax.ShapeDtypeStruct((BT, GO), jnp.float32),
        in_specs=[pl.BlockSpec(memory_space=pltpu.MemorySpace.VMEM)] * 2,
        out_specs=pl.BlockSpec(memory_space=pltpu.MemorySpace.VMEM),
    )(xin, const_slab)
    return out_flat.reshape(B, T, GO)


def reference_forward(gf, lf, params, num_heads):
    """Pure-JAX replica of the PyTorch forward, for verification."""
    B, T, G = gf.shape
    H = num_heads
    d = G // H
    lal = lf @ params["align_w"].T + params["align_b"]
    Q = jnp.transpose(gf, (1, 0, 2))
    K = jnp.transpose(lal, (1, 0, 2))
    V = Q
    Wq, Wk, Wv = jnp.split(params["in_proj_w"], 3, axis=0)
    bq, bk, bv = jnp.split(params["in_proj_b"], 3)
    q = Q @ Wq.T + bq
    k = K @ Wk.T + bk
    v = V @ Wv.T + bv

    def split_heads(x):
        return x.reshape(T, B, H, d).transpose(1, 2, 0, 3)   # [B, H, T, d]

    qh, kh, vh = split_heads(q), split_heads(k), split_heads(v)
    s = jnp.einsum("bhtd,bhsd->bhts", qh, kh) * (1.0 / d ** 0.5)
    ctx = jnp.einsum("bhts,bhsd->bhtd", jax.nn.softmax(s, axis=-1), vh)
    ctx = ctx.transpose(2, 0, 1, 3).reshape(T, B, G)
    attn_out = ctx @ params["out_proj_w"].T + params["out_proj_b"]

    scores = jnp.einsum("tbg,tcg->tbc", Q, K) / (G ** 0.5)
    alt = jnp.einsum("tbc,tcg->tbg", jax.nn.softmax(scores, axis=-1), V)

    h1 = jax.nn.relu(gf.reshape(B * T, G) @ params["a1_w"].T + params["a1_b"])
    alpha = jax.nn.sigmoid(h1 @ params["a2_w"].T + params["a2_b"])
    alpha = alpha.reshape(B, T, 1).transpose(1, 0, 2)

    comb = alpha * attn_out + (1.0 - alpha) * alt
    return jnp.transpose(comb, (1, 0, 2)) @ params["out_w"].T + params["out_b"]


if __name__ == "__main__":
    B, T = 2, 8
    GLOBAL_DIM, LOCAL_DIM, NUM_HEADS = 32, 16, 4

    key = jax.random.PRNGKey(0)
    keys = jax.random.split(key, 14)

    def w(k, shape, scale=0.1):
        return (scale * jax.random.normal(k, shape)).astype(jnp.float32)

    params = {
        "align_w": w(keys[0], (GLOBAL_DIM, LOCAL_DIM)),
        "align_b": w(keys[1], (GLOBAL_DIM,)),
        "in_proj_w": w(keys[2], (3 * GLOBAL_DIM, GLOBAL_DIM)),
        "in_proj_b": w(keys[3], (3 * GLOBAL_DIM,)),
        "out_proj_w": w(keys[4], (GLOBAL_DIM, GLOBAL_DIM)),
        "out_proj_b": w(keys[5], (GLOBAL_DIM,)),
        "a1_w": w(keys[6], (GLOBAL_DIM // 2, GLOBAL_DIM)),
        "a1_b": w(keys[7], (GLOBAL_DIM // 2,)),
        "a2_w": w(keys[8], (1, GLOBAL_DIM // 2)),
        "a2_b": w(keys[9], (1,)),
        "out_w": w(keys[10], (GLOBAL_DIM + LOCAL_DIM, GLOBAL_DIM)),
        "out_b": w(keys[11], (GLOBAL_DIM + LOCAL_DIM,)),
    }
    global_features = jax.random.normal(keys[12], (B, T, GLOBAL_DIM), dtype=jnp.float32)
    local_features = jax.random.normal(keys[13], (B, T, LOCAL_DIM), dtype=jnp.float32)

    # One-time parameter packing (hoisted out of the per-call path).
    const_slab = jax.block_until_ready(
        pack_modal_fusion7_params(params, B, T, NUM_HEADS))

    out = modal_fusion7_forward(global_features, local_features, const_slab,
                                num_heads=NUM_HEADS)
    out = jax.block_until_ready(out)

    ref = reference_forward(global_features, local_features, params, NUM_HEADS)
    assert out.shape == (B, T, GLOBAL_DIM + LOCAL_DIM)
    max_err = float(jnp.max(jnp.abs(out - ref)))
    # All-f32 matmul path; slack covers the approx (EUP) reciprocals in the softmaxes.
    assert max_err < 1e-2, f"max abs error {max_err}"
    print("KERNEL_OK")
</pallas_src>

<mosaic_0001>
module attributes {stable_mosaic.version = 11 : i64} {
  func.func @kernel(%arg0: memref<16x49xf32, #tpu.memory_space<vmem>>, %arg1: memref<248x128xf32, #tpu.memory_space<vmem>>, %arg2: memref<16x48xf32, #tpu.memory_space<vmem>>) attributes {dimension_semantics = [], scalar_prefetch = 0 : i64, scratch_operands = 0 : i64, tpu.core_type = #tpu.core_type<tc>} {
    %c0 = arith.constant 0 : index
    %c0_0 = arith.constant 0 : index
    %0 = vector.load %arg0[%c0, %c0_0] : memref<16x49xf32, #tpu.memory_space<vmem>>, vector<16x49xf32>
    %1 = vector.extract_strided_slice %0 {offsets = [0, 0], sizes = [16, 32], strides = [1, 1]} : vector<16x49xf32> to vector<16x32xf32>
    %c0_1 = arith.constant 0 : index
    %c0_2 = arith.constant 0 : index
    %2 = vector.load %arg1[%c0_1, %c0_2] : memref<248x128xf32, #tpu.memory_space<vmem>>, vector<49x128xf32>
    %cst = arith.constant dense<0.000000e+00> : vector<16x128xf32>
    %3 = tpu.matmul %0, %2, %cst {dimension_numbers = #tpu.dot_dimension_numbers<[1], [0], [0], [1], [0, 0, 1, 1], [], []>} : vector<16x49xf32>, vector<49x128xf32>, vector<16x128xf32> -> vector<16x128xf32>
    %4 = vector.extract_strided_slice %3 {offsets = [0, 0], sizes = [16, 32], strides = [1, 1]} : vector<16x128xf32> to vector<16x32xf32>
    %5 = vector.extract_strided_slice %3 {offsets = [0, 32], sizes = [16, 32], strides = [1, 1]} : vector<16x128xf32> to vector<16x32xf32>
    %6 = vector.extract_strided_slice %3 {offsets = [0, 64], sizes = [16, 32], strides = [1, 1]} : vector<16x128xf32> to vector<16x32xf32>
    %7 = vector.extract_strided_slice %3 {offsets = [0, 96], sizes = [16, 32], strides = [1, 1]} : vector<16x128xf32> to vector<16x32xf32>
    %c56 = arith.constant 56 : index
    %c0_3 = arith.constant 0 : index
    %8 = vector.load %arg1[%c56, %c0_3] : memref<248x128xf32, #tpu.memory_space<vmem>>, vector<49x16xf32>
    %cst_4 = arith.constant dense<0.000000e+00> : vector<16x16xf32>
    %9 = tpu.matmul %0, %8, %cst_4 {dimension_numbers = #tpu.dot_dimension_numbers<[1], [0], [0], [1], [0, 0, 1, 1], [], []>} : vector<16x49xf32>, vector<49x16xf32>, vector<16x16xf32> -> vector<16x16xf32>
    %cst_5 = arith.constant 0.000000e+00 : f32
    %10 = vector.broadcast %cst_5 : f32 to vector<16x16xf32>
    %11 = arith.maximumf %9, %10 : vector<16x16xf32>
    %c240 = arith.constant 240 : index
    %c32 = arith.constant 32 : index
    %12 = vector.load %arg1[%c240, %c32] : memref<248x128xf32, #tpu.memory_space<vmem>>, vector<1x16xf32>
    %c240_6 = arith.constant 240 : index
    %c48 = arith.constant 48 : index
    %13 = vector.load %arg1[%c240_6, %c48] : memref<248x128xf32, #tpu.memory_space<vmem>>, vector<1x1xf32>
    %14 = vector.broadcast %12 : vector<1x16xf32> to vector<16x16xf32>
    %15 = arith.mulf %11, %14 : vector<16x16xf32>
    %cst_7 = arith.constant dense<0.000000e+00> : vector<16xf32>
    %16 = vector.multi_reduction <add>, %15, %cst_7 [1] : vector<16x16xf32> to vector<16xf32>
    %17 = vector.shape_cast %16 : vector<16xf32> to vector<16x1xf32>
    %18 = vector.broadcast %13 : vector<1x1xf32> to vector<16x1xf32>
    %19 = arith.addf %17, %18 : vector<16x1xf32>
    %20 = arith.negf %19 : vector<16x1xf32>
    %21 = math.exp %20 : vector<16x1xf32>
    %cst_8 = arith.constant 1.000000e+00 : f32
    %22 = vector.broadcast %cst_8 : f32 to vector<16x1xf32>
    %23 = arith.addf %22, %21 : vector<16x1xf32>
    %24 = arith.divf %22, %23 : vector<16x1xf32>
    %c112 = arith.constant 112 : index
    %c0_9 = arith.constant 0 : index
    %25 = vector.load %arg1[%c112, %c0_9] : memref<248x128xf32, #tpu.memory_space<vmem>>, vector<64x32xf32>
    %c112_10 = arith.constant 112 : index
    %c32_11 = arith.constant 32 : index
    %26 = vector.load %arg1[%c112_10, %c32_11] : memref<248x128xf32, #tpu.memory_space<vmem>>, vector<64x16xf32>
    %27 = tpu.concatenate %4, %4, %4, %4 in 0 : vector<16x32xf32>, vector<16x32xf32>, vector<16x32xf32>, vector<16x32xf32> -> vector<64x32xf32>
    %28 = arith.mulf %27, %25 : vector<64x32xf32>
    %cst_12 = arith.constant dense<0.000000e+00> : vector<64x16xf32>
    %29 = tpu.matmul %28, %7, %cst_12 {dimension_numbers = #tpu.dot_dimension_numbers<[1], [1], [0], [0], [0, 0, 1, 0], [], []>} : vector<64x32xf32>, vector<16x32xf32>, vector<64x16xf32> -> vector<64x16xf32>
    %30 = arith.addf %29, %26 : vector<64x16xf32>
    %cst_13 = arith.constant dense<0xFF800000> : vector<64xf32>
    %31 = vector.multi_reduction <maximumf>, %30, %cst_13 [1] : vector<64x16xf32> to vector<64xf32>
    %32 = vector.shape_cast %31 : vector<64xf32> to vector<64x1xf32>
    %33 = vector.broadcast %32 : vector<64x1xf32> to vector<64x16xf32>
    %34 = arith.subf %30, %33 : vector<64x16xf32>
    %35 = math.exp %34 : vector<64x16xf32>
    %cst_14 = arith.constant dense<0.000000e+00> : vector<64xf32>
    %36 = vector.multi_reduction <add>, %35, %cst_14 [1] : vector<64x16xf32> to vector<64xf32>
    %37 = vector.shape_cast %36 : vector<64xf32> to vector<64x1xf32>
    %38 = tpu.reciprocal %37 {approx = true} : vector<64x1xf32> -> vector<64x1xf32>
    %39 = vector.broadcast %38 : vector<64x1xf32> to vector<64x16xf32>
    %40 = arith.mulf %35, %39 : vector<64x16xf32>
    %cst_15 = arith.constant dense<0.000000e+00> : vector<64x32xf32>
    %41 = tpu.matmul %40, %5, %cst_15 {dimension_numbers = #tpu.dot_dimension_numbers<[1], [0], [0], [1], [0, 0, 1, 1], [], []>} : vector<64x16xf32>, vector<16x32xf32>, vector<64x32xf32> -> vector<64x32xf32>
    %42 = arith.mulf %41, %25 : vector<64x32xf32>
    %43 = vector.extract_strided_slice %42 {offsets = [0, 0], sizes = [16, 32], strides = [1, 1]} : vector<64x32xf32> to vector<16x32xf32>
    %44 = vector.extract_strided_slice %42 {offsets = [16, 0], sizes = [16, 32], strides = [1, 1]} : vector<64x32xf32> to vector<16x32xf32>
    %45 = arith.addf %43, %44 : vector<16x32xf32>
    %46 = vector.extract_strided_slice %42 {offsets = [32, 0], sizes = [16, 32], strides = [1, 1]} : vector<64x32xf32> to vector<16x32xf32>
    %47 = arith.addf %45, %46 : vector<16x32xf32>
    %48 = vector.extract_strided_slice %42 {offsets = [48, 0], sizes = [16, 32], strides = [1, 1]} : vector<64x32xf32> to vector<16x32xf32>
    %49 = arith.addf %47, %48 : vector<16x32xf32>
    %c176 = arith.constant 176 : index
    %c0_16 = arith.constant 0 : index
    %50 = vector.load %arg1[%c176, %c0_16] : memref<248x128xf32, #tpu.memory_space<vmem>>, vector<32x32xf32>
    %cst_17 = arith.constant dense<0.000000e+00> : vector<16x32xf32>
    %51 = tpu.matmul %49, %50, %cst_17 {dimension_numbers = #tpu.dot_dimension_numbers<[1], [0], [0], [1], [0, 0, 1, 1], [], []>} : vector<16x32xf32>, vector<32x32xf32>, vector<16x32xf32> -> vector<16x32xf32>
    %c240_18 = arith.constant 240 : index
    %c0_19 = arith.constant 0 : index
    %52 = vector.load %arg1[%c240_18, %c0_19] : memref<248x128xf32, #tpu.memory_space<vmem>>, vector<1x32xf32>
    %53 = vector.broadcast %52 : vector<1x32xf32> to vector<16x32xf32>
    %54 = arith.addf %51, %53 : vector<16x32xf32>
    %55 = vector.extract_strided_slice %1 {offsets = [0, 0], sizes = [8, 32], strides = [1, 1]} : vector<16x32xf32> to vector<8x32xf32>
    %56 = vector.extract_strided_slice %1 {offsets = [8, 0], sizes = [8, 32], strides = [1, 1]} : vector<16x32xf32> to vector<8x32xf32>
    %57 = vector.extract_strided_slice %6 {offsets = [0, 0], sizes = [8, 32], strides = [1, 1]} : vector<16x32xf32> to vector<8x32xf32>
    %58 = vector.extract_strided_slice %6 {offsets = [8, 0], sizes = [8, 32], strides = [1, 1]} : vector<16x32xf32> to vector<8x32xf32>
    %59 = arith.mulf %55, %57 : vector<8x32xf32>
    %cst_20 = arith.constant dense<0.000000e+00> : vector<8xf32>
    %60 = vector.multi_reduction <add>, %59, %cst_20 [1] : vector<8x32xf32> to vector<8xf32>
    %61 = vector.shape_cast %60 : vector<8xf32> to vector<8x1xf32>
    %62 = arith.mulf %55, %58 : vector<8x32xf32>
    %cst_21 = arith.constant dense<0.000000e+00> : vector<8xf32>
    %63 = vector.multi_reduction <add>, %62, %cst_21 [1] : vector<8x32xf32> to vector<8xf32>
    %64 = vector.shape_cast %63 : vector<8xf32> to vector<8x1xf32>
    %65 = arith.mulf %56, %57 : vector<8x32xf32>
    %cst_22 = arith.constant dense<0.000000e+00> : vector<8xf32>
    %66 = vector.multi_reduction <add>, %65, %cst_22 [1] : vector<8x32xf32> to vector<8xf32>
    %67 = vector.shape_cast %66 : vector<8xf32> to vector<8x1xf32>
    %68 = arith.mulf %56, %58 : vector<8x32xf32>
    %cst_23 = arith.constant dense<0.000000e+00> : vector<8xf32>
    %69 = vector.multi_reduction <add>, %68, %cst_23 [1] : vector<8x32xf32> to vector<8xf32>
    %70 = vector.shape_cast %69 : vector<8xf32> to vector<8x1xf32>
    %71 = arith.subf %61, %64 : vector<8x1xf32>
    %72 = arith.negf %71 : vector<8x1xf32>
    %73 = math.exp %72 : vector<8x1xf32>
    %cst_24 = arith.constant 1.000000e+00 : f32
    %74 = vector.broadcast %cst_24 : f32 to vector<8x1xf32>
    %75 = arith.addf %74, %73 : vector<8x1xf32>
    %76 = arith.divf %74, %75 : vector<8x1xf32>
    %77 = arith.subf %67, %70 : vector<8x1xf32>
    %78 = arith.negf %77 : vector<8x1xf32>
    %79 = math.exp %78 : vector<8x1xf32>
    %cst_25 = arith.constant 1.000000e+00 : f32
    %80 = vector.broadcast %cst_25 : f32 to vector<8x1xf32>
    %81 = arith.addf %80, %79 : vector<8x1xf32>
    %82 = arith.divf %80, %81 : vector<8x1xf32>
    %83 = vector.broadcast %76 : vector<8x1xf32> to vector<8x32xf32>
    %84 = arith.mulf %83, %55 : vector<8x32xf32>
    %cst_26 = arith.constant 1.000000e+00 : f32
    %85 = vector.broadcast %cst_26 : f32 to vector<8x1xf32>
    %86 = arith.subf %85, %76 : vector<8x1xf32>
    %87 = vector.broadcast %86 : vector<8x1xf32> to vector<8x32xf32>
    %88 = arith.mulf %87, %56 : vector<8x32xf32>
    %89 = arith.addf %84, %88 : vector<8x32xf32>
    %90 = vector.broadcast %82 : vector<8x1xf32> to vector<8x32xf32>
    %91 = arith.mulf %90, %55 : vector<8x32xf32>
    %cst_27 = arith.constant 1.000000e+00 : f32
    %92 = vector.broadcast %cst_27 : f32 to vector<8x1xf32>
    %93 = arith.subf %92, %82 : vector<8x1xf32>
    %94 = vector.broadcast %93 : vector<8x1xf32> to vector<8x32xf32>
    %95 = arith.mulf %94, %56 : vector<8x32xf32>
    %96 = arith.addf %91, %95 : vector<8x32xf32>
    %97 = tpu.concatenate %89, %96 in 0 : vector<8x32xf32>, vector<8x32xf32> -> vector<16x32xf32>
    %98 = vector.broadcast %24 : vector<16x1xf32> to vector<16x32xf32>
    %99 = arith.mulf %98, %54 : vector<16x32xf32>
    %cst_28 = arith.constant 1.000000e+00 : f32
    %100 = vector.broadcast %cst_28 : f32 to vector<16x1xf32>
    %101 = arith.subf %100, %24 : vector<16x1xf32>
    %102 = vector.broadcast %101 : vector<16x1xf32> to vector<16x32xf32>
    %103 = arith.mulf %102, %97 : vector<16x32xf32>
    %104 = arith.addf %99, %103 : vector<16x32xf32>
    %c208 = arith.constant 208 : index
    %c0_29 = arith.constant 0 : index
    %105 = vector.load %arg1[%c208, %c0_29] : memref<248x128xf32, #tpu.memory_space<vmem>>, vector<32x48xf32>
    %cst_30 = arith.constant dense<0.000000e+00> : vector<16x48xf32>
    %106 = tpu.matmul %104, %105, %cst_30 {dimension_numbers = #tpu.dot_dimension_numbers<[1], [0], [0], [1], [0, 0, 1, 1], [], []>} : vector<16x32xf32>, vector<32x48xf32>, vector<16x48xf32> -> vector<16x48xf32>
    %c241 = arith.constant 241 : index
    %c0_31 = arith.constant 0 : index
    %107 = vector.load %arg1[%c241, %c0_31] : memref<248x128xf32, #tpu.memory_space<vmem>>, vector<1x48xf32>
    %108 = vector.broadcast %107 : vector<1x48xf32> to vector<16x48xf32>
    %109 = arith.addf %106, %108 : vector<16x48xf32>
    %c0_32 = arith.constant 0 : index
    %c0_33 = arith.constant 0 : index
    %110 = vector.load %arg2[%c0_32, %c0_33] : memref<16x48xf32, #tpu.memory_space<vmem>>, vector<16x48xf32>
    tpu.vector_store %arg2[%c0_32, %c0_33], %109 {strides = array<i32>} : memref<16x48xf32, #tpu.memory_space<vmem>>, vector<16x48xf32>,
    return
  }
}

</mosaic_0001>

<llo_original>
// kernel: modal_fusion7_forward.1
$region0: #{modal_fusion7_forward.1}
  #allocation0 [shape = 'u32[]', space=smem, size = 0x4, offset = 0x4, fixed_abs, tag = 'smem constant byte address 0x4 - core index']
  #allocation1 [shape = 'u32[144,128]{1,0:T(1,128)}', space=vmem, size = 0x12000, scoped, tag = 'internal scratch']
  %s0 = inlined_call_operand.vmem [shape: f32[16,49], index: 0, kind: input, shape index: {}]
  %s1 = inlined_call_operand.hbm [shape: f32[248,128], index: 1, kind: input, shape index: {}]
  %s2 = inlined_call_operand.hbm [shape: f32[16,48], index: 2, kind: output, shape index: {}]
  %s3 = sld [smem:[#allocation0]]
  $region22: #{modal_fusion7_forward.1} parent=0
    _
  %s5 = ssub.s32 1, %s3
  %s6 = scalar_select 0, %s5, %s3
  $region1: #{modal_fusion7_forward.1} parent=0
    #allocation2 [shape = 'u8[126976]{0}', space=vmem, size = 0x1f000, scoped, tag = 'input window, operand 1, single buffered']
    #allocation3 [shape = 's32[1]{0}', space=sflag, size = 0x4, scoped, tag = 'scoped memory for modal_fusion7_forward.1']
    #allocation4 [shape = 's32[1]{0}', space=sflag, size = 0x4, scoped, tag = 'scoped memory for modal_fusion7_forward.1']
    #allocation5 [shape = 'u8[8192]{0}', space=vmem, size = 0x2000, scoped, tag = 'output window, operand 0, single buffered']
    %7 = vsyncpa [#allocation3], 0
    %8 = vsyncpa [#allocation4], 0
    // Predicated region
    $region2: #{modal_fusion7_forward.1} parent=1 // pred_check
      _
    $region3: #{modal_fusion7_forward.1} parent=1 // pred_check_branch
      %10 = sbr.rel (0) target = $region5
    $region4: #{modal_fusion7_forward.1} parent=1 // pred_region
      _
    $region5: #{modal_fusion7_forward.1} parent=1 // pred_fallthru
      _
    // Predicated region
    $region6: #{modal_fusion7_forward.1} parent=1 // pred_check
      _
    $region7: #{modal_fusion7_forward.1} parent=1 // pred_check_branch
      %12 = sbr.rel (0) target = $region9
    $region8: #{modal_fusion7_forward.1} parent=1 // pred_region
      %s14 = ssub.s32 3968, 3968
      %15 = vsyncadd [#allocation3], %s14
      %s16 = sshll.u32 [#allocation2], 4
      %s17 = int_to_ptr.vmem [resolvable:$true] %s16
      %22 = dma.hbm_to_vmem [thread:$0]  %s1, 3968, %s17, [#allocation3], 128, 128, 8
    $region9: #{modal_fusion7_forward.1} parent=1 // pred_fallthru
      _
    // Predicated region
    $region10: #{modal_fusion7_forward.1} parent=1 // pred_check
      _
    $region11: #{modal_fusion7_forward.1} parent=1 // pred_check_branch
      %24 = sbr.rel (0) target = $region13
    $region12: #{modal_fusion7_forward.1} parent=1 // pred_region
      %25 = dma.done [#allocation3], 3968
    $region13: #{modal_fusion7_forward.1} parent=1 // pred_fallthru
      _
    %v26 = vld [vmem:[%s0] sm:$0xff]
    %v27 = vld [vmem:[%s0 + $0x8] sm:$0xff]
    %v28 = vld [vmem:[#allocation2] sm:$0xff]
    %v29 = vld [vmem:[#allocation2 + $0x8] sm:$0xff]
    %v30 = vld [vmem:[#allocation2 + $0x10] sm:$0xff]
    %v31 = vld [vmem:[#allocation2 + $0x18] sm:$0xff]
    %v32 = vld [vmem:[#allocation2 + $0x20] sm:$0xff]
    %v33 = vld [vmem:[#allocation2 + $0x28] sm:$0xff]
    %v34 = vld [vmem:[#allocation2 + $0x30] sm:$0x1]
    %vm35 = vcmask 400384
    %v37 = vsel %vm35, %v26, 0
    %v40 = vsel %vm35, %v27, 0
    %vm42 = vcmask 1040384
    %v44 = vsel %vm42, %v34, 0
    %46 = vmatprep.subr.mxu0 0.0
    %47 = vmatpush1.msra.mxu0 %v28
    %48 = vmatprep.subr.mxu0 0.0
    %49 = vmatpush1.msra.mxu0 %v29
    %50 = vmatprep.subr.mxu0 0.0
    %51 = vmatpush1.msra.mxu0 %v30
    %52 = vmatprep.subr.mxu0 0.0
    %53 = vmatpush1.msra.mxu0 %v31
    %54 = vmatprep.subr.mxu0 0.0
    %55 = vmatpush1.msra.mxu0 %v32
    %56 = vmatprep.subr.mxu0 0.0
    %57 = vmatpush1.msra.mxu0 %v33
    %58 = vmatprep.subr.mxu0 0.0
    %59 = vmatpush1.msra.mxu0 %v44
    %60 = vmatprep.subr.mxu0 0.0
    %61 = vmatpush1.msra.mxu0 0.0
    %62 = vmatprep.subr.mxu0 0.0
    %63 = vmatpush1.msra.mxu0 0.0
    %64 = vmatprep.subr.mxu0 0.0
    %65 = vmatpush1.msra.mxu0 0.0
    %66 = vmatprep.subr.mxu0 0.0
    %67 = vmatpush1.msra.mxu0 0.0
    %68 = vmatprep.subr.mxu0 0.0
    %69 = vmatpush1.msra.mxu0 0.0
    %70 = vmatprep.subr.mxu0 0.0
    %71 = vmatpush1.msra.mxu0 0.0
    %72 = vmatprep.subr.mxu0 0.0
    %73 = vmatpush1.msra.mxu0 0.0
    %74 = vmatprep.subr.mxu0 0.0
    %75 = vmatpush1.msra.mxu0 0.0
    %76 = vmatprep.subr.mxu0 0.0
    %77 = vmatpush1.msra.mxu0 0.0
    %78 = vmatprep.subr.mxu0 0.0
    %79 = vmatpush1.msra.mxu0 0.0
    %80 = vmatprep.subr.mxu0 0.0
    %81 = vmatpush1.msra.mxu0 0.0
    %82 = vmatprep.subr.mxu0 0.0
    %83 = vmatpush1.msra.mxu0 0.0
    %84 = vmatprep.subr.mxu0 0.0
    %85 = vmatpush1.msra.mxu0 0.0
    %86 = vmatprep.subr.mxu0 0.0
    %87 = vmatpush1.msra.mxu0 0.0
    %88 = vmatprep.subr.mxu0 0.0
    %89 = vmatpush1.msra.mxu0 0.0
    %90 = vmatprep.subr.mxu0 0.0
    %91 = vmatpush1.msra.mxu0 0.0
    %92 = vmatprep.subr.mxu0 0.0
    %93 = vmatpush1.msra.mxu0 0.0
    %94 = vmatprep.subr.mxu0 0.0
    %95 = vmatpush1.msra.mxu0 0.0
    %96 = vmatprep.subr.mxu0 0.0
    %97 = vmatpush1.msra.mxu0 0.0
    %98 = vmatprep.subr.mxu0 0.0
    %99 = vmatpush1.msra.mxu0 0.0
    %100 = vmatprep.subr.mxu0 0.0
    %101 = vmatpush1.msra.mxu0 0.0
    %102 = vmatprep.subr.mxu0 0.0
    %103 = vmatpush1.msra.mxu0 0.0
    %104 = vmatprep.subr.mxu0 0.0
    %105 = vmatpush1.msra.mxu0 0.0
    %106 = vmatprep.subr.mxu0 0.0
    %107 = vmatpush1.msra.mxu0 0.0
    %108 = vmatprep.subr.mxu0 0.0
    %109 = vmatpush1.msra.mxu0 0.0
    %110 = vmatprep.mubr.f32.mxu0 0.0
    %111 = vmatmul.mubr.f32.gmra.mrb[0].mxu0 %v37
    %v112 = vpop.f32.mrb[0].mxu0
    %v113 = vadd.f32 0.0, %v112
    %v114 = vpop.f32.mrb[0].mxu0
    %115 = vmatprep.mubr.f32.mxu0 0.0
    %116 = vmatmul.mubr.f32.gmra.mrb[0].mxu0 %v40
    %v117 = vpop.f32.mrb[0].mxu0
    %v118 = vadd.f32 0.0, %v117
    %v119 = vpop.f32.mrb[0].mxu0
    %120 = vdwg.mxu0
    %v121 = vld [vmem:[#allocation2 + $0x38] sm:$0xff]
    %v122 = vld [vmem:[#allocation2 + $0x40] sm:$0xff]
    %v123 = vld [vmem:[#allocation2 + $0x48] sm:$0xff]
    %v124 = vld [vmem:[#allocation2 + $0x50] sm:$0xff]
    %v125 = vld [vmem:[#allocation2 + $0x58] sm:$0xff]
    %v126 = vld [vmem:[#allocation2 + $0x60] sm:$0xff]
    %v127 = vld [vmem:[#allocation2 + $0x68] sm:$0x1]
    %v129 = vsel %vm42, %v127, 0
    %131 = vmatprep.subr.mxu0 0.0
    %132 = vmatpush1.msra.mxu0 %v121
    %133 = vmatprep.subr.mxu0 0.0
    %134 = vmatpush1.msra.mxu0 %v122
    %135 = vmatprep.subr.mxu0 0.0
    %136 = vmatpush1.msra.mxu0 %v123
    %137 = vmatprep.subr.mxu0 0.0
    %138 = vmatpush1.msra.mxu0 %v124
    %139 = vmatprep.subr.mxu0 0.0
    %140 = vmatpush1.msra.mxu0 %v125
    %141 = vmatprep.subr.mxu0 0.0
    %142 = vmatpush1.msra.mxu0 %v126
    %143 = vmatprep.subr.mxu0 0.0
    %144 = vmatpush1.msra.mxu0 %v129
    %145 = vmatprep.subr.mxu0 0.0
    %146 = vmatpush1.msra.mxu0 0.0
    %147 = vmatprep.subr.mxu0 0.0
    %148 = vmatpush1.msra.mxu0 0.0
    %149 = vmatprep.subr.mxu0 0.0
    %150 = vmatpush1.msra.mxu0 0.0
    %151 = vmatprep.subr.mxu0 0.0
    %152 = vmatpush1.msra.mxu0 0.0
    %153 = vmatprep.subr.mxu0 0.0
    %154 = vmatpush1.msra.mxu0 0.0
    %155 = vmatprep.subr.mxu0 0.0
    %156 = vmatpush1.msra.mxu0 0.0
    %157 = vmatprep.subr.mxu0 0.0
    %158 = vmatpush1.msra.mxu0 0.0
    %159 = vmatprep.subr.mxu0 0.0
    %160 = vmatpush1.msra.mxu0 0.0
    %161 = vmatprep.subr.mxu0 0.0
    %162 = vmatpush1.msra.mxu0 0.0
    %163 = vmatprep.subr.mxu0 0.0
    %164 = vmatpush1.msra.mxu0 0.0
    %165 = vmatprep.subr.mxu0 0.0
    %166 = vmatpush1.msra.mxu0 0.0
    %167 = vmatprep.subr.mxu0 0.0
    %168 = vmatpush1.msra.mxu0 0.0
    %169 = vmatprep.subr.mxu0 0.0
    %170 = vmatpush1.msra.mxu0 0.0
    %171 = vmatprep.subr.mxu0 0.0
    %172 = vmatpush1.msra.mxu0 0.0
    %173 = vmatprep.subr.mxu0 0.0
    %174 = vmatpush1.msra.mxu0 0.0
    %175 = vmatprep.subr.mxu0 0.0
    %176 = vmatpush1.msra.mxu0 0.0
    %177 = vmatprep.subr.mxu0 0.0
    %178 = vmatpush1.msra.mxu0 0.0
    %179 = vmatprep.subr.mxu0 0.0
    %180 = vmatpush1.msra.mxu0 0.0
    %181 = vmatprep.subr.mxu0 0.0
    %182 = vmatpush1.msra.mxu0 0.0
    %183 = vmatprep.subr.mxu0 0.0
    %184 = vmatpush1.msra.mxu0 0.0
    %185 = vmatprep.subr.mxu0 0.0
    %186 = vmatpush1.msra.mxu0 0.0
    %187 = vmatprep.subr.mxu0 0.0
    %188 = vmatpush1.msra.mxu0 0.0
    %189 = vmatprep.subr.mxu0 0.0
    %190 = vmatpush1.msra.mxu0 0.0
    %191 = vmatprep.subr.mxu0 0.0
    %192 = vmatpush1.msra.mxu0 0.0
    %193 = vmatprep.subr.mxu0 0.0
    %194 = vmatpush1.msra.mxu0 0.0
    %195 = vmatprep.mubr.f32.mxu0 0.0
    %196 = vmatmul.mubr.f32.gmra.mrb[0].mxu0 %v37
    %v197 = vpop.f32.mrb[0].mxu0
    %v198 = vadd.f32 0.0, %v197
    %v199 = vpop.f32.mrb[0].mxu0
    %200 = vmatprep.mubr.f32.mxu0 0.0
    %201 = vmatmul.mubr.f32.gmra.mrb[0].mxu0 %v40
    %v202 = vpop.f32.mrb[0].mxu0
    %v203 = vadd.f32 0.0, %v202
    %v204 = vpop.f32.mrb[0].mxu0
    %205 = vdwg.mxu0
    %v206 = vmax.f32 %v198, 0.0
    %v207 = vmax.f32 %v203, 0.0
    %v208 = vld [vmem:[#allocation2 + $0xf0] sm:$0x1]
    %v209 = vlaneseq
    %v210 = vshrl.u32 %v209, 7
    %v211 = vsub.s32 0, %v210
    %v212 = vrot.slane %v208, %v211
    %214 = vrot.lane.b32.xlu0 %v212, 96
    %v215 = vpop.permute.xlu0 %214
    %v217 = vmul.f32 %v206, %v215
    %v218 = vmul.f32 %v207, %v215
    %vm219 = vcmask 130048
    %v220 = vsel %vm219, %v217, 0.0
    %221 = vadd.xlane.f32.xlu0 %v220
    %v222 = vpop.xlane.xlu0 %221
    %v223 = vsel %vm219, %v218, 0.0
    %224 = vadd.xlane.f32.xlu0 %v223
    %v225 = vpop.xlane.xlu0 %224
    %v226 = vadd.f32 %v222, %v212
    %v227 = vadd.f32 %v225, %v212
    %v228 = vxor.u32 %v226, 2147483648
    %v229 = vxor.u32 %v227, 2147483648
    %v230 = vmul.f32 %v228, 1.442695
    %v231 = vpow.pop %v230
    %v232 = vmul.f32 %v229, 1.442695
    %v233 = vpow.pop %v232
    %v234 = vadd.f32 %v231, 1.0
    %v235 = vadd.f32 %v233, 1.0
    %v236 = vrcp.pop %v234
    %v237 = vmul.f32 1.0, %v236
    %v238 = vrcp.pop %v235
    %v239 = vmul.f32 1.0, %v238
    %v240 = vld [vmem:[#allocation2 + $0x70] sm:$0xff]
    %v241 = vld [vmem:[#allocation2 + $0x78] sm:$0xff]
    %v242 = vld [vmem:[#allocation2 + $0x80] sm:$0xff]
    %v243 = vld [vmem:[#allocation2 + $0x88] sm:$0xff]
    %v244 = vld [vmem:[#allocation2 + $0x90] sm:$0xff]
    %v245 = vld [vmem:[#allocation2 + $0x98] sm:$0xff]
    %v246 = vld [vmem:[#allocation2 + $0xa0] sm:$0xff]
    %v247 = vld [vmem:[#allocation2 + $0xa8] sm:$0xff]
    %v248 = vmul.f32 %v113, %v240
    %v249 = vmul.f32 %v118, %v241
    %v250 = vmul.f32 %v113, %v242
    %v251 = vmul.f32 %v118, %v243
    %v252 = vmul.f32 %v113, %v244
    %v253 = vmul.f32 %v118, %v245
    %v254 = vmul.f32 %v113, %v246
    %v255 = vmul.f32 %v118, %v247
    %258 = vrot.lane.b32.xlu0 %v113, 32
    %v259 = vpop.permute.xlu0 %258
    %260 = vrot.lane.b32.xlu0 %v118, 32
    %v261 = vpop.permute.xlu0 %260
    %270 = vrot.lane.b32.xlu0 %v240, 96
    %v271 = vpop.permute.xlu0 %270
    %272 = vrot.lane.b32.xlu0 %v241, 96
    %v273 = vpop.permute.xlu0 %272
    %274 = vrot.lane.b32.xlu0 %v242, 96
    %v275 = vpop.permute.xlu0 %274
    %276 = vrot.lane.b32.xlu0 %v243, 96
    %v277 = vpop.permute.xlu0 %276
    %278 = vrot.lane.b32.xlu0 %v244, 96
    %v279 = vpop.permute.xlu0 %278
    %280 = vrot.lane.b32.xlu0 %v245, 96
    %v281 = vpop.permute.xlu0 %280
    %282 = vrot.lane.b32.xlu0 %v246, 96
    %v283 = vpop.permute.xlu0 %282
    %284 = vrot.lane.b32.xlu0 %v247, 96
    %v285 = vpop.permute.xlu0 %284
    %vm294 = vcmask 261120
    %v296 = vsel %vm294, %v248, 0
    %v299 = vsel %vm294, %v249, 0
    %v302 = vsel %vm294, %v250, 0
    %v305 = vsel %vm294, %v251, 0
    %v308 = vsel %vm294, %v252, 0
    %v311 = vsel %vm294, %v253, 0
    %v314 = vsel %vm294, %v254, 0
    %v317 = vsel %vm294, %v255, 0
    %v319 = vsel %vm294, %v259, 0
    %v321 = vsel %vm294, %v261, 0
    %323 = vmatprep.subr.mxu0 0.0
    %324 = vmatpush1.xpose.msra.mxu0 %v319
    %325 = vmatprep.subr.mxu0 0.0
    %326 = vmatpush1.xpose.msra.mxu0 %v321
    %327 = vmatprep.subr.mxu0 0.0
    %328 = vmatpush1.xpose.msra.mxu0 0.0
    %329 = vmatprep.subr.mxu0 0.0
    %330 = vmatpush1.xpose.msra.mxu0 0.0
    %331 = vmatprep.subr.mxu0 0.0
    %332 = vmatpush1.xpose.msra.mxu0 0.0
    %333 = vmatprep.subr.mxu0 0.0
    %334 = vmatpush1.xpose.msra.mxu0 0.0
    %335 = vmatprep.subr.mxu0 0.0
    %336 = vmatpush1.xpose.msra.mxu0 0.0
    %337 = vmatprep.subr.mxu0 0.0
    %338 = vmatpush1.xpose.msra.mxu0 0.0
    %339 = vmatprep.subr.mxu0 0.0
    %340 = vmatpush1.xpose.msra.mxu0 0.0
    %341 = vmatprep.subr.mxu0 0.0
    %342 = vmatpush1.xpose.msra.mxu0 0.0
    %343 = vmatprep.subr.mxu0 0.0
    %344 = vmatpush1.xpose.msra.mxu0 0.0
    %345 = vmatprep.subr.mxu0 0.0
    %346 = vmatpush1.xpose.msra.mxu0 0.0
    %347 = vmatprep.subr.mxu0 0.0
    %348 = vmatpush1.xpose.msra.mxu0 0.0
    %349 = vmatprep.subr.mxu0 0.0
    %350 = vmatpush1.xpose.msra.mxu0 0.0
    %351 = vmatprep.subr.mxu0 0.0
    %352 = vmatpush1.xpose.msra.mxu0 0.0
    %353 = vmatprep.subr.mxu0 0.0
    %354 = vmatpush1.xpose.msra.mxu0 0.0
    %355 = vmatprep.subr.mxu0 0.0
    %356 = vmatpush1.xpose.msra.mxu0 0.0
    %357 = vmatprep.subr.mxu0 0.0
    %358 = vmatpush1.xpose.msra.mxu0 0.0
    %359 = vmatprep.subr.mxu0 0.0
    %360 = vmatpush1.xpose.msra.mxu0 0.0
    %361 = vmatprep.subr.mxu0 0.0
    %362 = vmatpush1.xpose.msra.mxu0 0.0
    %363 = vmatprep.subr.mxu0 0.0
    %364 = vmatpush1.xpose.msra.mxu0 0.0
    %365 = vmatprep.subr.mxu0 0.0
    %366 = vmatpush1.xpose.msra.mxu0 0.0
    %367 = vmatprep.subr.mxu0 0.0
    %368 = vmatpush1.xpose.msra.mxu0 0.0
    %369 = vmatprep.subr.mxu0 0.0
    %370 = vmatpush1.xpose.msra.mxu0 0.0
    %371 = vmatprep.subr.mxu0 0.0
    %372 = vmatpush1.xpose.msra.mxu0 0.0
    %373 = vmatprep.subr.mxu0 0.0
    %374 = vmatpush1.xpose.msra.mxu0 0.0
    %375 = vmatprep.subr.mxu0 0.0
    %376 = vmatpush1.xpose.msra.mxu0 0.0
    %377 = vmatprep.subr.mxu0 0.0
    %378 = vmatpush1.xpose.msra.mxu0 0.0
    %379 = vmatprep.subr.mxu0 0.0
    %380 = vmatpush1.xpose.msra.mxu0 0.0
    %381 = vmatprep.subr.mxu0 0.0
    %382 = vmatpush1.xpose.msra.mxu0 0.0
    %383 = vmatprep.subr.mxu0 0.0
    %384 = vmatpush1.xpose.msra.mxu0 0.0
    %385 = vmatprep.subr.mxu0 0.0
    %386 = vmatpush1.xpose.msra.mxu0 0.0
    %387 = vmatprep.mubr.f32.mxu0 0.0
    %388 = vmatmul.mubr.f32.gmra.mrb[0].mxu0 %v296
    %v389 = vpop.f32.mrb[0].mxu0
    %v390 = vadd.f32 %v271, %v389
    %v391 = vpop.f32.mrb[0].mxu0
    %392 = vmatprep.mubr.f32.mxu0 0.0
    %393 = vmatmul.mubr.f32.gmra.mrb[0].mxu0 %v299
    %v394 = vpop.f32.mrb[0].mxu0
    %v395 = vadd.f32 %v273, %v394
    %v396 = vpop.f32.mrb[0].mxu0
    %397 = vmatprep.mubr.f32.mxu0 0.0
    %398 = vmatmul.mubr.f32.gmra.mrb[0].mxu0 %v302
    %v399 = vpop.f32.mrb[0].mxu0
    %v400 = vadd.f32 %v275, %v399
    %v401 = vpop.f32.mrb[0].mxu0
    %402 = vmatprep.mubr.f32.mxu0 0.0
    %403 = vmatmul.mubr.f32.gmra.mrb[0].mxu0 %v305
    %v404 = vpop.f32.mrb[0].mxu0
    %v405 = vadd.f32 %v277, %v404
    %v406 = vpop.f32.mrb[0].mxu0
    %407 = vmatprep.mubr.f32.mxu0 0.0
    %408 = vmatmul.mubr.f32.gmra.mrb[0].mxu0 %v308
    %v409 = vpop.f32.mrb[0].mxu0
    %v410 = vadd.f32 %v279, %v409
    %v411 = vpop.f32.mrb[0].mxu0
    %412 = vmatprep.mubr.f32.mxu0 0.0
    %413 = vmatmul.mubr.f32.gmra.mrb[0].mxu0 %v311
    %v414 = vpop.f32.mrb[0].mxu0
    %v415 = vadd.f32 %v281, %v414
    %v416 = vpop.f32.mrb[0].mxu0
    %417 = vmatprep.mubr.f32.mxu0 0.0
    %418 = vmatmul.mubr.f32.gmra.mrb[0].mxu0 %v314
    %v419 = vpop.f32.mrb[0].mxu0
    %v420 = vadd.f32 %v283, %v419
    %v421 = vpop.f32.mrb[0].mxu0
    %422 = vmatprep.mubr.f32.mxu0 0.0
    %423 = vmatmul.mubr.f32.gmra.mrb[0].mxu0 %v317
    %v424 = vpop.f32.mrb[0].mxu0
    %v425 = vadd.f32 %v285, %v424
    %v426 = vpop.f32.mrb[0].mxu0
    %427 = vdwg.mxu0
    %v428 = vsel %vm219, %v390, -inf
    %429 = vmax.xlane.f32.xlu0 %v428
    %v430 = vpop.xlane.xlu0 %429
    %v431 = vsel %vm219, %v395, -inf
    %432 = vmax.xlane.f32.xlu0 %v431
    %v433 = vpop.xlane.xlu0 %432
    %v434 = vsel %vm219, %v400, -inf
    %435 = vmax.xlane.f32.xlu0 %v434
    %v436 = vpop.xlane.xlu0 %435
    %v437 = vsel %vm219, %v405, -inf
    %438 = vmax.xlane.f32.xlu0 %v437
    %v439 = vpop.xlane.xlu0 %438
    %v440 = vsel %vm219, %v410, -inf
    %441 = vmax.xlane.f32.xlu0 %v440
    %v442 = vpop.xlane.xlu0 %441
    %v443 = vsel %vm219, %v415, -inf
    %444 = vmax.xlane.f32.xlu0 %v443
    %v445 = vpop.xlane.xlu0 %444
    %v446 = vsel %vm219, %v420, -inf
    %447 = vmax.xlane.f32.xlu0 %v446
    %v448 = vpop.xlane.xlu0 %447
    %v449 = vsel %vm219, %v425, -inf
    %450 = vmax.xlane.f32.xlu0 %v449
    %v451 = vpop.xlane.xlu0 %450
    %v452 = vsub.f32 %v390, %v430
    %v453 = vsub.f32 %v395, %v433
    %v454 = vsub.f32 %v400, %v436
    %v455 = vsub.f32 %v405, %v439
    %v456 = vsub.f32 %v410, %v442
    %v457 = vsub.f32 %v415, %v445
    %v458 = vsub.f32 %v420, %v448
    %v459 = vsub.f32 %v425, %v451
    %v460 = vmul.f32 %v452, 1.442695
    %v461 = vpow.pop %v460
    %v462 = vmul.f32 %v453, 1.442695
    %v463 = vpow.pop %v462
    %v464 = vmul.f32 %v454, 1.442695
    %v465 = vpow.pop %v464
    %v466 = vmul.f32 %v455, 1.442695
    %v467 = vpow.pop %v466
    %v468 = vmul.f32 %v456, 1.442695
    %v469 = vpow.pop %v468
    %v470 = vmul.f32 %v457, 1.442695
    %v471 = vpow.pop %v470
    %v472 = vmul.f32 %v458, 1.442695
    %v473 = vpow.pop %v472
    %v474 = vmul.f32 %v459, 1.442695
    %v475 = vpow.pop %v474
    %v476 = vsel %vm219, %v461, 0.0
    %477 = vadd.xlane.f32.xlu0 %v476
    %v478 = vpop.xlane.xlu0 %477
    %v479 = vsel %vm219, %v463, 0.0
    %480 = vadd.xlane.f32.xlu0 %v479
    %v481 = vpop.xlane.xlu0 %480
    %v482 = vsel %vm219, %v465, 0.0
    %483 = vadd.xlane.f32.xlu0 %v482
    %v484 = vpop.xlane.xlu0 %483
    %v485 = vsel %vm219, %v467, 0.0
    %486 = vadd.xlane.f32.xlu0 %v485
    %v487 = vpop.xlane.xlu0 %486
    %v488 = vsel %vm219, %v469, 0.0
    %489 = vadd.xlane.f32.xlu0 %v488
    %v490 = vpop.xlane.xlu0 %489
    %v491 = vsel %vm219, %v471, 0.0
    %492 = vadd.xlane.f32.xlu0 %v491
    %v493 = vpop.xlane.xlu0 %492
    %v494 = vsel %vm219, %v473, 0.0
    %495 = vadd.xlane.f32.xlu0 %v494
    %v496 = vpop.xlane.xlu0 %495
    %v497 = vsel %vm219, %v475, 0.0
    %498 = vadd.xlane.f32.xlu0 %v497
    %v499 = vpop.xlane.xlu0 %498
    %v500 = vrcp.pop %v478
    %v501 = vrcp.pop %v481
    %v502 = vrcp.pop %v484
    %v503 = vrcp.pop %v487
    %v504 = vrcp.pop %v490
    %v505 = vrcp.pop %v493
    %v506 = vrcp.pop %v496
    %v507 = vrcp.pop %v499
    %v508 = vmul.f32 %v461, %v500
    %v509 = vmul.f32 %v463, %v501
    %v510 = vmul.f32 %v465, %v502
    %v511 = vmul.f32 %v467, %v503
    %v512 = vmul.f32 %v469, %v504
    %v513 = vmul.f32 %v471, %v505
    %v514 = vmul.f32 %v473, %v506
    %v515 = vmul.f32 %v475, %v507
    %516 = vrot.lane.b32.xlu0 %v113, 96
    %v517 = vpop.permute.xlu0 %516
    %518 = vrot.lane.b32.xlu0 %v118, 96
    %v519 = vpop.permute.xlu0 %518
    %v523 = vsel %vm219, %v508, 0
    %v526 = vsel %vm219, %v509, 0
    %v529 = vsel %vm219, %v510, 0
    %v532 = vsel %vm219, %v511, 0
    %v535 = vsel %vm219, %v512, 0
    %v538 = vsel %vm219, %v513, 0
    %v541 = vsel %vm219, %v514, 0
    %v544 = vsel %vm219, %v515, 0
    %546 = vmatprep.subr.mxu0 0.0
    %547 = vmatpush1.msra.mxu0 %v517
    %548 = vmatprep.subr.mxu0 0.0
    %549 = vmatpush1.msra.mxu0 %v519
    %550 = vmatprep.subr.mxu0 0.0
    %551 = vmatpush1.msra.mxu0 0.0
    %552 = vmatprep.subr.mxu0 0.0
    %553 = vmatpush1.msra.mxu0 0.0
    %554 = vmatprep.subr.mxu0 0.0
    %555 = vmatpush1.msra.mxu0 0.0
    %556 = vmatprep.subr.mxu0 0.0
    %557 = vmatpush1.msra.mxu0 0.0
    %558 = vmatprep.subr.mxu0 0.0
    %559 = vmatpush1.msra.mxu0 0.0
    %560 = vmatprep.subr.mxu0 0.0
    %561 = vmatpush1.msra.mxu0 0.0
    %562 = vmatprep.subr.mxu0 0.0
    %563 = vmatpush1.msra.mxu0 0.0
    %564 = vmatprep.subr.mxu0 0.0
    %565 = vmatpush1.msra.mxu0 0.0
    %566 = vmatprep.subr.mxu0 0.0
    %567 = vmatpush1.msra.mxu0 0.0
    %568 = vmatprep.subr.mxu0 0.0
    %569 = vmatpush1.msra.mxu0 0.0
    %570 = vmatprep.subr.mxu0 0.0
    %571 = vmatpush1.msra.mxu0 0.0
    %572 = vmatprep.subr.mxu0 0.0
    %573 = vmatpush1.msra.mxu0 0.0
    %574 = vmatprep.subr.mxu0 0.0
    %575 = vmatpush1.msra.mxu0 0.0
    %576 = vmatprep.subr.mxu0 0.0
    %577 = vmatpush1.msra.mxu0 0.0
    %578 = vmatprep.subr.mxu0 0.0
    %579 = vmatpush1.msra.mxu0 0.0
    %580 = vmatprep.subr.mxu0 0.0
    %581 = vmatpush1.msra.mxu0 0.0
    %582 = vmatprep.subr.mxu0 0.0
    %583 = vmatpush1.msra.mxu0 0.0
    %584 = vmatprep.subr.mxu0 0.0
    %585 = vmatpush1.msra.mxu0 0.0
    %586 = vmatprep.subr.mxu0 0.0
    %587 = vmatpush1.msra.mxu0 0.0
    %588 = vmatprep.subr.mxu0 0.0
    %589 = vmatpush1.msra.mxu0 0.0
    %590 = vmatprep.subr.mxu0 0.0
    %591 = vmatpush1.msra.mxu0 0.0
    %592 = vmatprep.subr.mxu0 0.0
    %593 = vmatpush1.msra.mxu0 0.0
    %594 = vmatprep.subr.mxu0 0.0
    %595 = vmatpush1.msra.mxu0 0.0
    %596 = vmatprep.subr.mxu0 0.0
    %597 = vmatpush1.msra.mxu0 0.0
    %598 = vmatprep.subr.mxu0 0.0
    %599 = vmatpush1.msra.mxu0 0.0
    %600 = vmatprep.subr.mxu0 0.0
    %601 = vmatpush1.msra.mxu0 0.0
    %602 = vmatprep.subr.mxu0 0.0
    %603 = vmatpush1.msra.mxu0 0.0
    %604 = vmatprep.subr.mxu0 0.0
    %605 = vmatpush1.msra.mxu0 0.0
    %606 = vmatprep.subr.mxu0 0.0
    %607 = vmatpush1.msra.mxu0 0.0
    %608 = vmatprep.subr.mxu0 0.0
    %609 = vmatpush1.msra.mxu0 0.0
    %610 = vmatprep.mubr.f32.mxu0 0.0
    %611 = vmatmul.mubr.f32.gmra.mrb[0].mxu0 %v523
    %v612 = vpop.f32.mrb[0].mxu0
    %v613 = vadd.f32 0.0, %v612
    %v614 = vpop.f32.mrb[0].mxu0
    %615 = vmatprep.mubr.f32.mxu0 0.0
    %616 = vmatmul.mubr.f32.gmra.mrb[0].mxu0 %v526
    %v617 = vpop.f32.mrb[0].mxu0
    %v618 = vadd.f32 0.0, %v617
    %v619 = vpop.f32.mrb[0].mxu0
    %620 = vmatprep.mubr.f32.mxu0 0.0
    %621 = vmatmul.mubr.f32.gmra.mrb[0].mxu0 %v529
    %v622 = vpop.f32.mrb[0].mxu0
    %v623 = vadd.f32 0.0, %v622
    %v624 = vpop.f32.mrb[0].mxu0
    %625 = vmatprep.mubr.f32.mxu0 0.0
    %626 = vmatmul.mubr.f32.gmra.mrb[0].mxu0 %v532
    %v627 = vpop.f32.mrb[0].mxu0
    %v628 = vadd.f32 0.0, %v627
    %v629 = vpop.f32.mrb[0].mxu0
    %630 = vmatprep.mubr.f32.mxu0 0.0
    %631 = vmatmul.mubr.f32.gmra.mrb[0].mxu0 %v535
    %v632 = vpop.f32.mrb[0].mxu0
    %v633 = vadd.f32 0.0, %v632
    %v634 = vpop.f32.mrb[0].mxu0
    %635 = vmatprep.mubr.f32.mxu0 0.0
    %636 = vmatmul.mubr.f32.gmra.mrb[0].mxu0 %v538
    %v637 = vpop.f32.mrb[0].mxu0
    %v638 = vadd.f32 0.0, %v637
    %v639 = vpop.f32.mrb[0].mxu0
    %640 = vmatprep.mubr.f32.mxu0 0.0
    %641 = vmatmul.mubr.f32.gmra.mrb[0].mxu0 %v541
    %v642 = vpop.f32.mrb[0].mxu0
    %v643 = vadd.f32 0.0, %v642
    %v644 = vpop.f32.mrb[0].mxu0
    %645 = vmatprep.mubr.f32.mxu0 0.0
    %646 = vmatmul.mubr.f32.gmra.mrb[0].mxu0 %v544
    %v647 = vpop.f32.mrb[0].mxu0
    %v648 = vadd.f32 0.0, %v647
    %v649 = vpop.f32.mrb[0].mxu0
    %650 = vdwg.mxu0
    %v651 = vmul.f32 %v613, %v240
    %v652 = vmul.f32 %v618, %v241
    %v653 = vmul.f32 %v623, %v242
    %v654 = vmul.f32 %v628, %v243
    %v655 = vmul.f32 %v633, %v244
    %v656 = vmul.f32 %v638, %v245
    %v657 = vmul.f32 %v643, %v246
    %v658 = vmul.f32 %v648, %v247
    %v659 = vadd.f32 %v651, %v653
    %v660 = vadd.f32 %v652, %v654
    %v661 = vadd.f32 %v659, %v655
    %v662 = vadd.f32 %v660, %v656
    %v663 = vadd.f32 %v661, %v657
    %v664 = vadd.f32 %v662, %v658
    %v665 = vld [vmem:[#allocation2 + $0xb0] sm:$0xff]
    %v666 = vld [vmem:[#allocation2 + $0xb8] sm:$0xff]
    %v667 = vld [vmem:[#allocation2 + $0xc0] sm:$0xff]
    %v668 = vld [vmem:[#allocation2 + $0xc8] sm:$0xff]
    %v670 = vsel %vm294, %v663, 0
    %v673 = vsel %vm294, %v664, 0
    %675 = vmatprep.subr.mxu0 0.0
    %676 = vmatpush1.msra.mxu0 %v665
    %677 = vmatprep.subr.mxu0 0.0
    %678 = vmatpush1.msra.mxu0 %v666
    %679 = vmatprep.subr.mxu0 0.0
    %680 = vmatpush1.msra.mxu0 %v667
    %681 = vmatprep.subr.mxu0 0.0
    %682 = vmatpush1.msra.mxu0 %v668
    %683 = vmatprep.subr.mxu0 0.0
    %684 = vmatpush1.msra.mxu0 0.0
    %685 = vmatprep.subr.mxu0 0.0
    %686 = vmatpush1.msra.mxu0 0.0
    %687 = vmatprep.subr.mxu0 0.0
    %688 = vmatpush1.msra.mxu0 0.0
    %689 = vmatprep.subr.mxu0 0.0
    %690 = vmatpush1.msra.mxu0 0.0
    %691 = vmatprep.subr.mxu0 0.0
    %692 = vmatpush1.msra.mxu0 0.0
    %693 = vmatprep.subr.mxu0 0.0
    %694 = vmatpush1.msra.mxu0 0.0
    %695 = vmatprep.subr.mxu0 0.0
    %696 = vmatpush1.msra.mxu0 0.0
    %697 = vmatprep.subr.mxu0 0.0
    %698 = vmatpush1.msra.mxu0 0.0
    %699 = vmatprep.subr.mxu0 0.0
    %700 = vmatpush1.msra.mxu0 0.0
    %701 = vmatprep.subr.mxu0 0.0
    %702 = vmatpush1.msra.mxu0 0.0
    %703 = vmatprep.subr.mxu0 0.0
    %704 = vmatpush1.msra.mxu0 0.0
    %705 = vmatprep.subr.mxu0 0.0
    %706 = vmatpush1.msra.mxu0 0.0
    %707 = vmatprep.subr.mxu0 0.0
    %708 = vmatpush1.msra.mxu0 0.0
    %709 = vmatprep.subr.mxu0 0.0
    %710 = vmatpush1.msra.mxu0 0.0
    %711 = vmatprep.subr.mxu0 0.0
    %712 = vmatpush1.msra.mxu0 0.0
    %713 = vmatprep.subr.mxu0 0.0
    %714 = vmatpush1.msra.mxu0 0.0
    %715 = vmatprep.subr.mxu0 0.0
    %716 = vmatpush1.msra.mxu0 0.0
    %717 = vmatprep.subr.mxu0 0.0
    %718 = vmatpush1.msra.mxu0 0.0
    %719 = vmatprep.subr.mxu0 0.0
    %720 = vmatpush1.msra.mxu0 0.0
    %721 = vmatprep.subr.mxu0 0.0
    %722 = vmatpush1.msra.mxu0 0.0
    %723 = vmatprep.subr.mxu0 0.0
    %724 = vmatpush1.msra.mxu0 0.0
    %725 = vmatprep.subr.mxu0 0.0
    %726 = vmatpush1.msra.mxu0 0.0
    %727 = vmatprep.subr.mxu0 0.0
    %728 = vmatpush1.msra.mxu0 0.0
    %729 = vmatprep.subr.mxu0 0.0
    %730 = vmatpush1.msra.mxu0 0.0
    %731 = vmatprep.subr.mxu0 0.0
    %732 = vmatpush1.msra.mxu0 0.0
    %733 = vmatprep.subr.mxu0 0.0
    %734 = vmatpush1.msra.mxu0 0.0
    %735 = vmatprep.subr.mxu0 0.0
    %736 = vmatpush1.msra.mxu0 0.0
    %737 = vmatprep.subr.mxu0 0.0
    %738 = vmatpush1.msra.mxu0 0.0
    %739 = vmatprep.mubr.f32.mxu0 0.0
    %740 = vmatmul.mubr.f32.gmra.mrb[0].mxu0 %v670
    %v741 = vpop.f32.mrb[0].mxu0
    %v742 = vadd.f32 %v212, %v741
    %v743 = vpop.f32.mrb[0].mxu0
    %744 = vmatprep.mubr.f32.mxu0 0.0
    %745 = vmatmul.mubr.f32.gmra.mrb[0].mxu0 %v673
    %v746 = vpop.f32.mrb[0].mxu0
    %v747 = vadd.f32 %v212, %v746
    %v748 = vpop.f32.mrb[0].mxu0
    %749 = vdwg.mxu0
    %750 = vrot.lane.b32.xlu0 %v113, 64
    %v751 = vpop.permute.xlu0 %750
    %v753 = vmul.f32 %v26, %v751
    %v754 = vsel %vm294, %v753, 0.0
    %755 = vadd.xlane.f32.xlu0 %v754
    %v756 = vpop.xlane.xlu0 %755
    %757 = vrot.lane.b32.xlu0 %v118, 64
    %v758 = vpop.permute.xlu0 %757
    %v760 = vmul.f32 %v26, %v758
    %v761 = vsel %vm294, %v760, 0.0
    %762 = vadd.xlane.f32.xlu0 %v761
    %v763 = vpop.xlane.xlu0 %762
    %v764 = vmul.f32 %v27, %v751
    %v765 = vsel %vm294, %v764, 0.0
    %766 = vadd.xlane.f32.xlu0 %v765
    %v767 = vpop.xlane.xlu0 %766
    %v768 = vmul.f32 %v27, %v758
    %v769 = vsel %vm294, %v768, 0.0
    %770 = vadd.xlane.f32.xlu0 %v769
    %v771 = vpop.xlane.xlu0 %770
    %v772 = vsub.f32 %v756, %v763
    %v773 = vxor.u32 %v772, 2147483648
    %v774 = vmul.f32 %v773, 1.442695
    %v775 = vpow.pop %v774
    %v776 = vadd.f32 %v775, 1.0
    %v777 = vrcp.pop %v776
    %v778 = vmul.f32 1.0, %v777
    %v779 = vsub.f32 %v767, %v771
    %v780 = vxor.u32 %v779, 2147483648
    %v781 = vmul.f32 %v780, 1.442695
    %v782 = vpow.pop %v781
    %v783 = vadd.f32 %v782, 1.0
    %v784 = vrcp.pop %v783
    %v785 = vmul.f32 1.0, %v784
    %v786 = vmul.f32 %v778, %v26
    %v787 = vsub.f32 1.0, %v778
    %v788 = vmul.f32 %v787, %v27
    %v789 = vadd.f32 %v786, %v788
    %v790 = vmul.f32 %v785, %v26
    %v791 = vsub.f32 1.0, %v785
    %v792 = vmul.f32 %v791, %v27
    %v793 = vadd.f32 %v790, %v792
    %795 = vset.pattern.permute.xlu0 48
    %796 = vperm.xlu0 %795, %v237
    %v797 = vpop.permute.xlu0 %796
    %800 = vset.pattern.permute.xlu0 48
    %801 = vperm.xlu0 %800, %v239
    %v802 = vpop.permute.xlu0 %801
    %v804 = vmul.f32 %v797, %v742
    %v805 = vmul.f32 %v802, %v747
    %v806 = vsub.f32 1.0, %v237
    %v807 = vsub.f32 1.0, %v239
    %809 = vset.pattern.permute.xlu0 48
    %810 = vperm.xlu0 %809, %v806
    %v811 = vpop.permute.xlu0 %810
    %814 = vset.pattern.permute.xlu0 48
    %815 = vperm.xlu0 %814, %v807
    %v816 = vpop.permute.xlu0 %815
    %v818 = vmul.f32 %v811, %v789
    %v819 = vmul.f32 %v816, %v793
    %v820 = vadd.f32 %v804, %v818
    %v821 = vadd.f32 %v805, %v819
    %v822 = vld [vmem:[#allocation2 + $0xd0] sm:$0xff]
    %v823 = vld [vmem:[#allocation2 + $0xd8] sm:$0xff]
    %v824 = vld [vmem:[#allocation2 + $0xe0] sm:$0xff]
    %v825 = vld [vmem:[#allocation2 + $0xe8] sm:$0xff]
    %v826 = vld [vmem:[#allocation2 + $0xf1] sm:$0x1]
    %v827 = vlaneseq
    %v828 = vshrl.u32 %v827, 7
    %v829 = vsub.s32 0, %v828
    %v830 = vrot.slane %v826, %v829
    %v832 = vsel %vm294, %v820, 0
    %v835 = vsel %vm294, %v821, 0
    %837 = vmatprep.subr.mxu0 0.0
    %838 = vmatpush1.msra.mxu0 %v822
    %839 = vmatprep.subr.mxu0 0.0
    %840 = vmatpush1.msra.mxu0 %v823
    %841 = vmatprep.subr.mxu0 0.0
    %842 = vmatpush1.msra.mxu0 %v824
    %843 = vmatprep.subr.mxu0 0.0
    %844 = vmatpush1.msra.mxu0 %v825
    %845 = vmatprep.subr.mxu0 0.0
    %846 = vmatpush1.msra.mxu0 0.0
    %847 = vmatprep.subr.mxu0 0.0
    %848 = vmatpush1.msra.mxu0 0.0
    %849 = vmatprep.subr.mxu0 0.0
    %850 = vmatpush1.msra.mxu0 0.0
    %851 = vmatprep.subr.mxu0 0.0
    %852 = vmatpush1.msra.mxu0 0.0
    %853 = vmatprep.subr.mxu0 0.0
    %854 = vmatpush1.msra.mxu0 0.0
    %855 = vmatprep.subr.mxu0 0.0
    %856 = vmatpush1.msra.mxu0 0.0
    %857 = vmatprep.subr.mxu0 0.0
    %858 = vmatpush1.msra.mxu0 0.0
    %859 = vmatprep.subr.mxu0 0.0
    %860 = vmatpush1.msra.mxu0 0.0
    %861 = vmatprep.subr.mxu0 0.0
    %862 = vmatpush1.msra.mxu0 0.0
    %863 = vmatprep.subr.mxu0 0.0
    %864 = vmatpush1.msra.mxu0 0.0
    %865 = vmatprep.subr.mxu0 0.0
    %866 = vmatpush1.msra.mxu0 0.0
    %867 = vmatprep.subr.mxu0 0.0
    %868 = vmatpush1.msra.mxu0 0.0
    %869 = vmatprep.subr.mxu0 0.0
    %870 = vmatpush1.msra.mxu0 0.0
    %871 = vmatprep.subr.mxu0 0.0
    %872 = vmatpush1.msra.mxu0 0.0
    %873 = vmatprep.subr.mxu0 0.0
    %874 = vmatpush1.msra.mxu0 0.0
    %875 = vmatprep.subr.mxu0 0.0
    %876 = vmatpush1.msra.mxu0 0.0
    %877 = vmatprep.subr.mxu0 0.0
    %878 = vmatpush1.msra.mxu0 0.0
    %879 = vmatprep.subr.mxu0 0.0
    %880 = vmatpush1.msra.mxu0 0.0
    %881 = vmatprep.subr.mxu0 0.0
    %882 = vmatpush1.msra.mxu0 0.0
    %883 = vmatprep.subr.mxu0 0.0
    %884 = vmatpush1.msra.mxu0 0.0
    %885 = vmatprep.subr.mxu0 0.0
    %886 = vmatpush1.msra.mxu0 0.0
    %887 = vmatprep.subr.mxu0 0.0
    %888 = vmatpush1.msra.mxu0 0.0
    %889 = vmatprep.subr.mxu0 0.0
    %890 = vmatpush1.msra.mxu0 0.0
    %891 = vmatprep.subr.mxu0 0.0
    %892 = vmatpush1.msra.mxu0 0.0
    %893 = vmatprep.subr.mxu0 0.0
    %894 = vmatpush1.msra.mxu0 0.0
    %895 = vmatprep.subr.mxu0 0.0
    %896 = vmatpush1.msra.mxu0 0.0
    %897 = vmatprep.subr.mxu0 0.0
    %898 = vmatpush1.msra.mxu0 0.0
    %899 = vmatprep.subr.mxu0 0.0
    %900 = vmatpush1.msra.mxu0 0.0
    %901 = vmatprep.mubr.f32.mxu0 0.0
    %902 = vmatmul.mubr.f32.gmra.mrb[0].mxu0 %v832
    %v903 = vpop.f32.mrb[0].mxu0
    %v904 = vadd.f32 %v830, %v903
    %v905 = vpop.f32.mrb[0].mxu0
    %906 = vmatprep.mubr.f32.mxu0 0.0
    %907 = vmatmul.mubr.f32.gmra.mrb[0].mxu0 %v835
    %v908 = vpop.f32.mrb[0].mxu0
    %v909 = vadd.f32 %v830, %v908
    %v910 = vpop.f32.mrb[0].mxu0
    %911 = vdwg.mxu0
    %vm912 = vcmask 392192
    %913 = vst.msk [vmem:[#allocation5] sm:$0xff] %vm912, %v904
    %914 = vst.msk [vmem:[#allocation5 + $0x8] sm:$0xff] %vm912, %v909
    // Predicated region
    $region14: #{modal_fusion7_forward.1} parent=1 // pred_check
      _
    $region15: #{modal_fusion7_forward.1} parent=1 // pred_check_branch
      %916 = sbr.rel (0) target = $region17
    $region16: #{modal_fusion7_forward.1} parent=1 // pred_region
      %s918 = ssub.s32 256, 256
      %919 = vsyncadd [#allocation4], %s918
      %s920 = sshll.u32 [#allocation5], 4
      %s921 = int_to_ptr.vmem [resolvable:$true] %s920
      %926 = dma.vmem_to_hbm [thread:$0]  %s921, 256, %s2, [#allocation4], 128, 128, 8
    $region17: #{modal_fusion7_forward.1} parent=1 // pred_fallthru
      _
    // Predicated region
    $region18: #{modal_fusion7_forward.1} parent=1 // pred_check
      _
    $region19: #{modal_fusion7_forward.1} parent=1 // pred_check_branch
      %928 = sbr.rel (0) target = $region21
    $region20: #{modal_fusion7_forward.1} parent=1 // pred_region
      %929 = dma.done [#allocation4], 256
    $region21: #{modal_fusion7_forward.1} parent=1 // pred_fallthru
      _
    %930 = vsyncpa [#allocation3], 1
    %931 = vsyncpa [#allocation4], 1

</llo_original>
